<compile_context>
chip_gen: v5e
topology: v5e:2x2
jax: 0.10.0
libtpu: 0.0.40
codegen_flags: <defaults>
</compile_context>

<pallas_src>
import numpy as np
import jax
import jax.numpy as jnp
from jax.experimental import pallas as pl
from jax.experimental.pallas import tpu as pltpu

KSIZE = 15
SIGMA = 3.0


# ----------------------------- parameter setup ------------------------------
def gaussian_kernel_1d(ksize, sigma):
    ax = np.arange(ksize, dtype=np.float64) - (ksize - 1) / 2.0
    k = np.exp(-(ax ** 2) / (2.0 * sigma ** 2))
    return (k / k.sum()).astype(np.float32)


def batch_kernel_param(batch, l=KSIZE, sigma=SIGMA):
    """Deterministic stand-in for TorchTools' batch_kernel_param: every batch
    element gets the same normalized isotropic Gaussian kernel.  Returns both
    the 2-D kernels (for the reference 2-D conv) and the separable 1-D taps
    (used by the Pallas kernel via folded band matrices)."""
    k1 = gaussian_kernel_1d(l, sigma)
    k2 = np.outer(k1, k1).astype(np.float32)                # normalized 2-D Gaussian
    kernels_2d = np.tile(k2[None, :, :], (batch, 1, 1))     # (B, K, K)
    kernels_1d = np.tile(k1[None, :], (batch, 1))           # (B, K)
    sigmas = np.full((batch,), sigma, dtype=np.float32)
    return kernels_2d, kernels_1d, sigmas


def folded_band_matrices(kernels_1d, H, W, ksize=KSIZE):
    """Band matrices with reflection padding folded in, so that
        A_v[b] @ d[b, c] @ A_h[b]  ==  'same' reflect-padded 2-D blur of d[b, c].
    A_v: (B, H, H), A_h: (B, W, W)."""
    k1d = np.asarray(kernels_1d, np.float32)
    B, K = k1d.shape
    assert K == ksize
    p = ksize // 2
    assert H > p and W > p, "reflection padding requires H, W > ksize//2"

    def refl(m, N):
        # padded index m in [0, N + 2p) -> source index in [0, N) (torch 'reflect')
        if m < p:
            return p - m
        if m < p + N:
            return m - p
        return 2 * N + p - 2 - m

    A_v = np.zeros((B, H, H), np.float32)
    A_h = np.zeros((B, W, W), np.float32)
    for t in range(K):
        for i in range(H):
            A_v[:, i, refl(i + t, H)] += k1d[:, t]   # out[i] = sum_t k[t]*d[refl(i+t)]
        for j in range(W):
            A_h[:, refl(j + t, W), j] += k1d[:, t]   # out[:,j] = sum_t k[t]*d[:,refl(j+t)]
    return A_v, A_h


# ------------------------------ pallas kernel --------------------------------
def make_color_loss_kernel(C, H, W):
    def kernel(av_ref, ah_ref, x1_ref, x2_ref, out_ref):
        av = av_ref[0]                                   # (H, H) reflect-folded vertical
        ah = ah_ref[0]                                   # (W, W) reflect-folded horizontal

        # Diff computed in-kernel (VPU, co-issues under the matmuls).
        d = (x1_ref[0] - x2_ref[0]).astype(jnp.float32)  # (C, H, W)

        # Horizontal pass fused over channels: (C*H, W) @ (W, W) on the MXU.
        # Leading-dim merge is a free row-major reshape (H is sublane-aligned).
        dh = jnp.dot(d.reshape(C * H, W), ah,
                     preferred_element_type=jnp.float32)  # (C*H, W)

        # Vertical pass per channel (C is small, static unroll); accumulate
        # squared blur into one (H, W) vector accumulator.
        sq = jnp.zeros((H, W), jnp.float32)
        for c in range(C):
            o = jnp.dot(av, dh[c * H:(c + 1) * H, :],
                        preferred_element_type=jnp.float32)  # (H, W)
            sq = sq + o * o

        # Single cross-lane/sublane reduction per step; lane-dense output block.
        out_ref[...] = jnp.broadcast_to(jnp.sum(sq), (1, 8, 128))

    return kernel


def color_loss(x1, x2, kernels_1d, ksize=KSIZE):
    """ColorLoss.forward with scale=1, loss='l2' (L2_loss, nn_func=False)."""
    B, C, H, W = x1.shape
    k1d = np.asarray(kernels_1d, np.float32)
    A_v_np, A_h_np = folded_band_matrices(k1d, H, W, ksize)

    # Dedup: if every batch element shares the same taps, keep ONE band matrix
    # VMEM-resident (constant block index) instead of re-DMA-ing it per step.
    shared = bool(np.all(k1d == k1d[:1]))
    if shared:
        A_v = jnp.asarray(A_v_np[:1])                    # (1, H, H)
        A_h = jnp.asarray(A_h_np[:1])                    # (1, W, W)
        av_map = lambda b: (0, 0, 0)
        ah_map = lambda b: (0, 0, 0)
    else:
        A_v = jnp.asarray(A_v_np)                        # (B, H, H)
        A_h = jnp.asarray(A_h_np)                        # (B, W, W)
        av_map = lambda b: (b, 0, 0)
        ah_map = lambda b: (b, 0, 0)

    # Explicit VMEM budget: double-buffered inputs + output block, with margin.
    tile_bytes = 4 * (H * H + W * W + 2 * C * H * W + 8 * 128)
    vmem_bytes = int(min(48 * 1024 * 1024, max(4 * 1024 * 1024, 4 * tile_bytes)))

    kern = make_color_loss_kernel(C, H, W)
    out = pl.pallas_call(
        kern,
        out_shape=jax.ShapeDtypeStruct((B, 8, 128), jnp.float32),
        grid_spec=pltpu.PrefetchScalarGridSpec(
            num_scalar_prefetch=0,
            grid=(B,),
            in_specs=[
                pl.BlockSpec((1, H, H), av_map),                    # A_v
                pl.BlockSpec((1, W, W), ah_map),                    # A_h
                pl.BlockSpec((1, C, H, W), lambda b: (b, 0, 0, 0)),  # x1[b]
                pl.BlockSpec((1, C, H, W), lambda b: (b, 0, 0, 0)),  # x2[b]
            ],
            out_specs=pl.BlockSpec((1, 8, 128), lambda b: (b, 0, 0)),
        ),
        compiler_params=pltpu.CompilerParams(
            dimension_semantics=("parallel",),
            vmem_limit_bytes=vmem_bytes),
    )(A_v, A_h, x1.astype(jnp.float32), x2.astype(jnp.float32))

    total = float(B * C * H * W)
    return jnp.sum(out[:, 0, 0]) / total                  # L2 == mean of squared diff


# ------------------------------ pure-JAX reference ---------------------------
def color_loss_ref(x1, x2, kernels_2d, ksize=KSIZE):
    """Direct translation of the PyTorch module: 2-D blur both images with the
    per-batch 2-D kernel (reflection 'same' padding), then mean squared diff."""
    B, C, H, W = x1.shape
    p = ksize // 2
    pad = ((0, 0), (0, 0), (p, p), (p, p))
    x1p = jnp.pad(x1, pad, mode="reflect")
    x2p = jnp.pad(x2, pad, mode="reflect")

    def blur(xp):
        out = jnp.zeros((B, C, H, W), jnp.float32)
        for dy in range(ksize):
            for dx in range(ksize):
                kv = kernels_2d[:, dy, dx][:, None, None, None]
                out = out + kv * xp[:, :, dy:dy + H, dx:dx + W]
        return out

    d = blur(x1p) - blur(x2p)
    return jnp.mean(d * d)


# ------------------------------------ main ------------------------------------
if __name__ == "__main__":
    B, C, H, W = 2, 3, 16, 16
    key = jax.random.PRNGKey(0)
    k1, k2 = jax.random.split(key)
    x1 = jax.random.normal(k1, (B, C, H, W), dtype=jnp.float32)
    x2 = jax.random.normal(k2, (B, C, H, W), dtype=jnp.float32)

    kernels_2d, kernels_1d, _ = batch_kernel_param(B, KSIZE, SIGMA)

    loss = color_loss(x1, x2, kernels_1d)
    loss = jax.block_until_ready(loss)

    ref = color_loss_ref(x1, x2, jnp.asarray(kernels_2d))
    assert np.allclose(np.asarray(loss), np.asarray(ref), rtol=1e-4, atol=1e-5), (
        float(loss), float(ref))
    print("KERNEL_OK")
</pallas_src>

<mosaic_0001>
module attributes {stable_mosaic.version = 11 : i64} {
  func.func @kernel(%arg0: i32, %arg1: memref<1x16x16xf32, #tpu.memory_space<vmem>>, %arg2: memref<1x16x16xf32, #tpu.memory_space<vmem>>, %arg3: memref<1x3x16x16xf32, #tpu.memory_space<vmem>>, %arg4: memref<1x3x16x16xf32, #tpu.memory_space<vmem>>, %arg5: memref<1x8x128xf32, #tpu.memory_space<vmem>>) attributes {dimension_semantics = [#tpu.dimension_semantics<parallel>], iteration_bounds = array<i64: 2>, scalar_prefetch = 0 : i64, scratch_operands = 0 : i64, tpu.core_type = #tpu.core_type<tc>, window_params = [{pipeline_mode = #tpu.pipeline_mode<synchronous>, transform_indices = @transform_0, window_bounds = array<i64: 1, 16, 16>}, {pipeline_mode = #tpu.pipeline_mode<synchronous>, transform_indices = @transform_1, window_bounds = array<i64: 1, 16, 16>}, {transform_indices = @transform_2, window_bounds = array<i64: 1, 3, 16, 16>}, {transform_indices = @transform_3, window_bounds = array<i64: 1, 3, 16, 16>}, {transform_indices = @transform_4, window_bounds = array<i64: 1, 8, 128>}]} {
    %c0 = arith.constant 0 : index
    %c0_0 = arith.constant 0 : index
    %c0_1 = arith.constant 0 : index
    %0 = vector.load %arg1[%c0, %c0_0, %c0_1] : memref<1x16x16xf32, #tpu.memory_space<vmem>>, vector<1x16x16xf32>
    %1 = vector.shape_cast %0 : vector<1x16x16xf32> to vector<16x16xf32>
    %c0_2 = arith.constant 0 : index
    %c0_3 = arith.constant 0 : index
    %c0_4 = arith.constant 0 : index
    %2 = vector.load %arg2[%c0_2, %c0_3, %c0_4] : memref<1x16x16xf32, #tpu.memory_space<vmem>>, vector<1x16x16xf32>
    %3 = vector.shape_cast %2 : vector<1x16x16xf32> to vector<16x16xf32>
    %c0_5 = arith.constant 0 : index
    %c0_6 = arith.constant 0 : index
    %c0_7 = arith.constant 0 : index
    %c0_8 = arith.constant 0 : index
    %4 = vector.load %arg3[%c0_5, %c0_6, %c0_7, %c0_8] : memref<1x3x16x16xf32, #tpu.memory_space<vmem>>, vector<1x3x16x16xf32>
    %5 = vector.shape_cast %4 : vector<1x3x16x16xf32> to vector<3x16x16xf32>
    %c0_9 = arith.constant 0 : index
    %c0_10 = arith.constant 0 : index
    %c0_11 = arith.constant 0 : index
    %c0_12 = arith.constant 0 : index
    %6 = vector.load %arg4[%c0_9, %c0_10, %c0_11, %c0_12] : memref<1x3x16x16xf32, #tpu.memory_space<vmem>>, vector<1x3x16x16xf32>
    %7 = vector.shape_cast %6 : vector<1x3x16x16xf32> to vector<3x16x16xf32>
    %8 = arith.subf %5, %7 : vector<3x16x16xf32>
    %9 = vector.shape_cast %8 : vector<3x16x16xf32> to vector<48x16xf32>
    %cst = arith.constant dense<0.000000e+00> : vector<48x16xf32>
    %10 = tpu.matmul %9, %3, %cst {dimension_numbers = #tpu.dot_dimension_numbers<[1], [0], [0], [1], [0, 0, 1, 1], [], []>} : vector<48x16xf32>, vector<16x16xf32>, vector<48x16xf32> -> vector<48x16xf32>
    %cst_13 = arith.constant 0.000000e+00 : f32
    %11 = vector.broadcast %cst_13 : f32 to vector<16x16xf32>
    %12 = vector.extract_strided_slice %10 {offsets = [0, 0], sizes = [16, 16], strides = [1, 1]} : vector<48x16xf32> to vector<16x16xf32>
    %cst_14 = arith.constant dense<0.000000e+00> : vector<16x16xf32>
    %13 = tpu.matmul %1, %12, %cst_14 {dimension_numbers = #tpu.dot_dimension_numbers<[1], [0], [0], [1], [0, 0, 1, 1], [], []>} : vector<16x16xf32>, vector<16x16xf32>, vector<16x16xf32> -> vector<16x16xf32>
    %14 = arith.mulf %13, %13 : vector<16x16xf32>
    %15 = arith.addf %11, %14 : vector<16x16xf32>
    %16 = vector.extract_strided_slice %10 {offsets = [16, 0], sizes = [16, 16], strides = [1, 1]} : vector<48x16xf32> to vector<16x16xf32>
    %cst_15 = arith.constant dense<0.000000e+00> : vector<16x16xf32>
    %17 = tpu.matmul %1, %16, %cst_15 {dimension_numbers = #tpu.dot_dimension_numbers<[1], [0], [0], [1], [0, 0, 1, 1], [], []>} : vector<16x16xf32>, vector<16x16xf32>, vector<16x16xf32> -> vector<16x16xf32>
    %18 = arith.mulf %17, %17 : vector<16x16xf32>
    %19 = arith.addf %15, %18 : vector<16x16xf32>
    %20 = vector.extract_strided_slice %10 {offsets = [32, 0], sizes = [16, 16], strides = [1, 1]} : vector<48x16xf32> to vector<16x16xf32>
    %cst_16 = arith.constant dense<0.000000e+00> : vector<16x16xf32>
    %21 = tpu.matmul %1, %20, %cst_16 {dimension_numbers = #tpu.dot_dimension_numbers<[1], [0], [0], [1], [0, 0, 1, 1], [], []>} : vector<16x16xf32>, vector<16x16xf32>, vector<16x16xf32> -> vector<16x16xf32>
    %22 = arith.mulf %21, %21 : vector<16x16xf32>
    %23 = arith.addf %19, %22 : vector<16x16xf32>
    %24 = vector.shape_cast %23 : vector<16x16xf32> to vector<1x16x16xf32>
    %cst_17 = arith.constant dense<0.000000e+00> : vector<1xf32>
    %25 = vector.multi_reduction <add>, %24, %cst_17 [1, 2] : vector<1x16x16xf32> to vector<1xf32>
    %26 = vector.shape_cast %25 : vector<1xf32> to vector<1x1x1xf32>
    %27 = vector.extract %26[0, 0, 0] : f32 from vector<1x1x1xf32>
    %28 = vector.broadcast %27 : f32 to vector<1x8x128xf32>
    %c0_18 = arith.constant 0 : index
    %c0_19 = arith.constant 0 : index
    %c0_20 = arith.constant 0 : index
    %29 = vector.load %arg5[%c0_18, %c0_19, %c0_20] : memref<1x8x128xf32, #tpu.memory_space<vmem>>, vector<1x8x128xf32>
    tpu.vector_store %arg5[%c0_18, %c0_19, %c0_20], %28 {strides = array<i32>} : memref<1x8x128xf32, #tpu.memory_space<vmem>>, vector<1x8x128xf32>,
    return
  }
  func.func @transform_0(%arg0: i32) -> (i32, i32, i32) {
    %c0_i32 = arith.constant 0 : i32
    %c0_i32_0 = arith.constant 0 : i32
    %c0_i32_1 = arith.constant 0 : i32
    %c0_i32_2 = arith.constant 0 : i32
    return %c0_i32, %c0_i32_0, %c0_i32_1 : i32, i32, i32
  }
  func.func @transform_1(%arg0: i32) -> (i32, i32, i32) {
    %c0_i32 = arith.constant 0 : i32
    %c0_i32_0 = arith.constant 0 : i32
    %c0_i32_1 = arith.constant 0 : i32
    %c0_i32_2 = arith.constant 0 : i32
    return %c0_i32, %c0_i32_0, %c0_i32_1 : i32, i32, i32
  }
  func.func @transform_2(%arg0: i32) -> (i32, i32, i32, i32) {
    %c0_i32 = arith.constant 0 : i32
    %c0_i32_0 = arith.constant 0 : i32
    %c0_i32_1 = arith.constant 0 : i32
    %c0_i32_2 = arith.constant 0 : i32
    return %arg0, %c0_i32, %c0_i32_0, %c0_i32_1 : i32, i32, i32, i32
  }
  func.func @transform_3(%arg0: i32) -> (i32, i32, i32, i32) {
    %c0_i32 = arith.constant 0 : i32
    %c0_i32_0 = arith.constant 0 : i32
    %c0_i32_1 = arith.constant 0 : i32
    %c0_i32_2 = arith.constant 0 : i32
    return %arg0, %c0_i32, %c0_i32_0, %c0_i32_1 : i32, i32, i32, i32
  }
  func.func @transform_4(%arg0: i32) -> (i32, i32, i32) {
    %c0_i32 = arith.constant 0 : i32
    %c0_i32_0 = arith.constant 0 : i32
    %c0_i32_1 = arith.constant 0 : i32
    return %arg0, %c0_i32, %c0_i32_0 : i32, i32, i32
  }
}

</mosaic_0001>

<llo_original>
// kernel: tpu_custom_call.1
$region0: #{tpu_custom_call.1}
  #allocation0 [shape = 'u32[]', space=smem, size = 0x4, offset = 0x4, fixed_abs, tag = 'smem constant byte address 0x4 - core index']
  #allocation1 [shape = 'u32[72,128]{1,0:T(1,128)}', space=vmem, size = 0x9000, scoped, tag = 'internal scratch']
  %s0 = inlined_call_operand.hbm [shape: f32[1,16,16], index: 0, kind: input, shape index: {}]
  %s1 = inlined_call_operand.hbm [shape: f32[1,16,16], index: 1, kind: input, shape index: {}]
  %s2 = inlined_call_operand.hbm [shape: f32[2,3,16,16], index: 2, kind: input, shape index: {}]
  %s3 = inlined_call_operand.hbm [shape: f32[2,3,16,16], index: 3, kind: input, shape index: {}]
  %s4 = inlined_call_operand.hbm [shape: f32[2,8,128], index: 4, kind: output, shape index: {}]
  %s5 = sld [smem:[#allocation0]]
  $region65: #{tpu_custom_call.1} parent=0
    _
  %s7 = ssub.s32 1, %s5
  %s8 = scalar_select 0, %s7, %s5
  $region1: #{tpu_custom_call.1} parent=0
    #allocation2 [shape = 'u8[8192]{0}', space=vmem, size = 0x2000, scoped, tag = 'input window, operand 0, single buffered']
    #allocation3 [shape = 's32[2]{0}', space=sflag, size = 0x8, scoped, tag = 'scoped memory for tpu_custom_call.1']
    #allocation4 [shape = 's32[2]{0}', space=sflag, size = 0x8, scoped, tag = 'scoped memory for tpu_custom_call.1']
    #allocation5 [shape = 'u8[8192]{0}', space=vmem, size = 0x2000, scoped, tag = 'input window, operand 1, single buffered']
    #allocation6 [shape = 's32[1]{0}', space=sflag, size = 0x4, scoped, tag = 'scoped memory for tpu_custom_call.1']
    #allocation7 [shape = 'u8[49152]{0}', space=vmem, size = 0xc000, scoped, tag = 'input window, operand 2']
    #allocation8 [shape = 'u8[49152]{0}', space=vmem, size = 0xc000, scoped, tag = 'input window, operand 3']
    #allocation9 [shape = 'u8[8192]{0}', space=vmem, size = 0x2000, scoped, tag = 'output window, operand 0']
    %9 = vsyncpa [#allocation3], 0
    %10 = vsyncpa [#allocation6], 0
    %11 = vsyncpa [#allocation4], 0
    %s12 = scalar_lea.sflag [#allocation4], 1
    %13 = vsyncpa %s12, 0
    loop: start=0, step=1, limit=4
    $region2: #{tpu_custom_call.1} parent=1 // loop_pre_header
      _
    $region3: #{tpu_custom_call.1} parent=1 // loop_header
      %s15 = sphi 0, %s19
      %p16 = scmp.ge.s32.totalorder %s15, 4
      %s23 = sphi 0, %s23
      %s25 = sphi 0, %s23
      %s26 = sphi 0, %s25
      %s40 = sphi 0, %s26
      %s44 = sphi 0, %s44
      %s46 = sphi 0, %s44
      %s47 = sphi 0, %s46
      %s61 = sphi 0, %s47
      %s67 = sphi 0, %s69
      %s70 = sphi 0, %s67
      %s71 = sphi 0, %s70
      %s87 = sphi 0, %s71
      %s93 = sphi 0, %s95
      %s96 = sphi 0, %s93
      %s97 = sphi 0, %s96
      %s113 = sphi 0, %s97
      %s119 = sphi 0, %s121
      %s122 = sphi 0, %s119
      %s123 = sphi 0, %s122
      %s139 = sphi 0, %s123
    $region4: #{tpu_custom_call.1} parent=1 // loop_header_branch
      %18 = sbr.rel (%p16) target = $region8
    $region5: #{tpu_custom_call.1} parent=1 // loop_body
      %s20 = ssub.s32 %s15, 1
      %s21 = ssub.s32 %s15, 2
      %s22 = sadd.s32 %s15, 1
      %s24 = sadd.s32 %s23, 1
      %p27 = scmp.eq.s32.totalorder %s15, 1
      %p28 = scmp.ne.s32.totalorder %s23, %s25
      %p29 = scmp.eq.s32.totalorder %s15, 0
      %p30 = por %p28, %p29
      %p31 = scmp.ne.s32.totalorder %s23, %s25
      %p32 = scmp.eq.s32.totalorder %s20, 1
      %p33 = por %p31, %p32
      %p34 = scmp.ne.s32.totalorder %s25, %s26
      %p35 = scmp.eq.s32.totalorder %s20, 0
      %p36 = por %p34, %p35
      %p37 = scmp.ne.s32.totalorder %s25, %s26
      %p38 = scmp.eq.s32.totalorder %s21, 1
      %p39 = por %p37, %p38
      %p41 = scmp.ne.s32.totalorder %s26, %s40
      %p42 = scmp.eq.s32.totalorder %s21, 0
      %p43 = por %p41, %p42
      %s45 = sadd.s32 %s44, 1
      %p48 = scmp.eq.s32.totalorder %s15, 1
      %p49 = scmp.ne.s32.totalorder %s44, %s46
      %p50 = scmp.eq.s32.totalorder %s15, 0
      %p51 = por %p49, %p50
      %p52 = scmp.ne.s32.totalorder %s44, %s46
      %p53 = scmp.eq.s32.totalorder %s20, 1
      %p54 = por %p52, %p53
      %p55 = scmp.ne.s32.totalorder %s46, %s47
      %p56 = scmp.eq.s32.totalorder %s20, 0
      %p57 = por %p55, %p56
      %p58 = scmp.ne.s32.totalorder %s46, %s47
      %p59 = scmp.eq.s32.totalorder %s21, 1
      %p60 = por %p58, %p59
      %p62 = scmp.ne.s32.totalorder %s47, %s61
      %p63 = scmp.eq.s32.totalorder %s21, 0
      %p64 = por %p62, %p63
      %s65 = ssub.s32 %s15, %s22
      %p66 = scmp.eq.s32.totalorder %s65, 0
      %s68 = sadd.s32 %s67, 1
      %s69 = scalar_select %p66, %s67, %s68
      %p72 = pneg %p66
      %p73 = scmp.eq.s32.totalorder %s15, 1
      %p74 = por %p72, %p73
      %p75 = scmp.ne.s32.totalorder %s67, %s70
      %p76 = scmp.eq.s32.totalorder %s15, 0
      %p77 = por %p75, %p76
      %p78 = scmp.ne.s32.totalorder %s67, %s70
      %p79 = scmp.eq.s32.totalorder %s20, 1
      %p80 = por %p78, %p79
      %p81 = scmp.ne.s32.totalorder %s70, %s71
      %p82 = scmp.eq.s32.totalorder %s20, 0
      %p83 = por %p81, %p82
      %p84 = scmp.ne.s32.totalorder %s70, %s71
      %p85 = scmp.eq.s32.totalorder %s21, 1
      %p86 = por %p84, %p85
      %p88 = scmp.ne.s32.totalorder %s71, %s87
      %p89 = scmp.eq.s32.totalorder %s21, 0
      %p90 = por %p88, %p89
      %s91 = ssub.s32 %s15, %s22
      %p92 = scmp.eq.s32.totalorder %s91, 0
      %s94 = sadd.s32 %s93, 1
      %s95 = scalar_select %p92, %s93, %s94
      %p98 = pneg %p92
      %p99 = scmp.eq.s32.totalorder %s15, 1
      %p100 = por %p98, %p99
      %p101 = scmp.ne.s32.totalorder %s93, %s96
      %p102 = scmp.eq.s32.totalorder %s15, 0
      %p103 = por %p101, %p102
      %p104 = scmp.ne.s32.totalorder %s93, %s96
      %p105 = scmp.eq.s32.totalorder %s20, 1
      %p106 = por %p104, %p105
      %p107 = scmp.ne.s32.totalorder %s96, %s97
      %p108 = scmp.eq.s32.totalorder %s20, 0
      %p109 = por %p107, %p108
      %p110 = scmp.ne.s32.totalorder %s96, %s97
      %p111 = scmp.eq.s32.totalorder %s21, 1
      %p112 = por %p110, %p111
      %p114 = scmp.ne.s32.totalorder %s97, %s113
      %p115 = scmp.eq.s32.totalorder %s21, 0
      %p116 = por %p114, %p115
      %s117 = ssub.s32 %s15, %s22
      %p118 = scmp.eq.s32.totalorder %s117, 0
      %s120 = sadd.s32 %s119, 1
      %s121 = scalar_select %p118, %s119, %s120
      %p124 = pneg %p118
      %p125 = scmp.eq.s32.totalorder %s15, 1
      %p126 = por %p124, %p125
      %p127 = scmp.ne.s32.totalorder %s119, %s122
      %p128 = scmp.eq.s32.totalorder %s15, 0
      %p129 = por %p127, %p128
      %p130 = scmp.ne.s32.totalorder %s119, %s122
      %p131 = scmp.eq.s32.totalorder %s20, 1
      %p132 = por %p130, %p131
      %p133 = scmp.ne.s32.totalorder %s122, %s123
      %p134 = scmp.eq.s32.totalorder %s20, 0
      %p135 = por %p133, %p134
      %p136 = scmp.ne.s32.totalorder %s122, %s123
      %p137 = scmp.eq.s32.totalorder %s21, 1
      %p138 = por %p136, %p137
      %p140 = scmp.ne.s32.totalorder %s123, %s139
      %p141 = scmp.eq.s32.totalorder %s21, 0
      %p142 = por %p140, %p141
      %p143 = scmp.le.s32.totalorder 1, %s15
      %p144 = scmp.lt.s32.totalorder %s15, 3
      %p145 = pnand %p143, %p144
      %p146 = pneg %p145
      // Predicated region
      $region9: #{tpu_custom_call.1} parent=5 // pred_check
        _
      $region10: #{tpu_custom_call.1} parent=5 // pred_check_branch
        %148 = sbr.rel (%p145) target = $region12
      $region11: #{tpu_custom_call.1} parent=5 // pred_region
        %s149 = ssub.s32 %s15, 1
        // Predicated region
        $region13: #{tpu_custom_call.1} parent=11 // pred_check
          %p150 = pneg %p36
        $region14: #{tpu_custom_call.1} parent=11 // pred_check_branch
          %152 = sbr.rel (%p150) target = $region16
        $region15: #{tpu_custom_call.1} parent=11 // pred_region
          %154 = vsyncadd [#allocation3], 0
          %s155 = sshll.u32 %s0, 4
          %s156 = int_to_ptr.hbm [resolvable:$true] %s155
          %s157 = sshll.u32 [#allocation2], 4
          %s158 = int_to_ptr.vmem [resolvable:$true] %s157
          %163 = dma.hbm_to_vmem [thread:$0]  %s156, 256, %s158, [#allocation3], 128, 128, 8
        $region16: #{tpu_custom_call.1} parent=11 // pred_fallthru
          _
        // Predicated region
        $region17: #{tpu_custom_call.1} parent=11 // pred_check
          %p164 = pneg %p57
        $region18: #{tpu_custom_call.1} parent=11 // pred_check_branch
          %166 = sbr.rel (%p164) target = $region20
        $region19: #{tpu_custom_call.1} parent=11 // pred_region
          %168 = vsyncadd [#allocation6], 0
          %s169 = sshll.u32 %s1, 4
          %s170 = int_to_ptr.hbm [resolvable:$true] %s169
          %s171 = sshll.u32 [#allocation5], 4
          %s172 = int_to_ptr.vmem [resolvable:$true] %s171
          %177 = dma.hbm_to_vmem [thread:$0]  %s170, 256, %s172, [#allocation6], 128, 128, 8
        $region20: #{tpu_custom_call.1} parent=11 // pred_fallthru
          _
      $region12: #{tpu_custom_call.1} parent=5 // pred_fallthru
        _
      %p178 = scmp.lt.s32.totalorder %s15, 2
      // Predicated region
      $region21: #{tpu_custom_call.1} parent=5 // pred_check
        %p179 = pneg %p178
      $region22: #{tpu_custom_call.1} parent=5 // pred_check_branch
        %181 = sbr.rel (%p179) target = $region24
      $region23: #{tpu_custom_call.1} parent=5 // pred_region
        // Predicated region
        $region25: #{tpu_custom_call.1} parent=23 // pred_check
          %p182 = pneg %p77
        $region26: #{tpu_custom_call.1} parent=23 // pred_check_branch
          %184 = sbr.rel (%p182) target = $region28
        $region27: #{tpu_custom_call.1} parent=23 // pred_region
          %s185 = sand.u32 %s15, 1
          %s186 = scalar_lea.sflag [#allocation3], %s185
          %s187 = sand.u32 %s67, 1
          %s188 = smul.addr %s187, 48
          %s189 = scalar_lea.vmem [#allocation7], %s188
          %191 = vsyncadd %s186, 0
          %s192 = smul.addr %s15, 6
          %s193 = smul.addr %s192, 8
          %s194 = scalar_lea.hbm %s2, %s193
          %s195 = sshll.u32 %s194, 4
          %s196 = int_to_ptr.hbm [resolvable:$true] %s195
          %s197 = sshll.u32 %s189, 4
          %s198 = int_to_ptr.vmem [resolvable:$true] %s197
          %203 = dma.hbm_to_vmem [thread:$0]  %s196, 768, %s198, %s186, 128, 128, 8
        $region28: #{tpu_custom_call.1} parent=23 // pred_fallthru
          _
        // Predicated region
        $region29: #{tpu_custom_call.1} parent=23 // pred_check
          %p204 = pneg %p103
        $region30: #{tpu_custom_call.1} parent=23 // pred_check_branch
          %206 = sbr.rel (%p204) target = $region32
        $region31: #{tpu_custom_call.1} parent=23 // pred_region
          %s207 = sand.u32 %s15, 1
          %s208 = scalar_lea.sflag [#allocation3], %s207
          %s209 = sand.u32 %s93, 1
          %s210 = smul.addr %s209, 48
          %s211 = scalar_lea.vmem [#allocation8], %s210
          %213 = vsyncadd %s208, 0
          %s214 = smul.addr %s15, 6
          %s215 = smul.addr %s214, 8
          %s216 = scalar_lea.hbm %s3, %s215
          %s217 = sshll.u32 %s216, 4
          %s218 = int_to_ptr.hbm [resolvable:$true] %s217
          %s219 = sshll.u32 %s211, 4
          %s220 = int_to_ptr.vmem [resolvable:$true] %s219
          %225 = dma.hbm_to_vmem [thread:$0]  %s218, 768, %s220, %s208, 128, 128, 8
        $region32: #{tpu_custom_call.1} parent=23 // pred_fallthru
          _
      $region24: #{tpu_custom_call.1} parent=5 // pred_fallthru
        _
      %p226 = scmp.le.s32.totalorder 1, %s15
      %p227 = scmp.lt.s32.totalorder %s15, 3
      %p228 = pnand %p226, %p227
      %p229 = pneg %p228
      // Predicated region
      $region33: #{tpu_custom_call.1} parent=5 // pred_check
        _
      $region34: #{tpu_custom_call.1} parent=5 // pred_check_branch
        %231 = sbr.rel (%p228) target = $region36
      $region35: #{tpu_custom_call.1} parent=5 // pred_region
        %s232 = ssub.s32 %s15, 1
        // Predicated region
        $region37: #{tpu_custom_call.1} parent=35 // pred_check
          %p233 = pneg %p36
        $region38: #{tpu_custom_call.1} parent=35 // pred_check_branch
          %235 = sbr.rel (%p233) target = $region40
        $region39: #{tpu_custom_call.1} parent=35 // pred_region
          %237 = dma.done [#allocation3], 256
        $region40: #{tpu_custom_call.1} parent=35 // pred_fallthru
          _
        // Predicated region
        $region41: #{tpu_custom_call.1} parent=35 // pred_check
          %p238 = pneg %p57
        $region42: #{tpu_custom_call.1} parent=35 // pred_check_branch
          %240 = sbr.rel (%p238) target = $region44
        $region43: #{tpu_custom_call.1} parent=35 // pred_region
          %242 = dma.done [#allocation6], 256
        $region44: #{tpu_custom_call.1} parent=35 // pred_fallthru
          _
        %s243 = sand.u32 %s20, 1
        %s244 = scalar_lea.sflag [#allocation3], %s243
        %s245 = sand.u32 %s70, 1
        %s246 = smul.addr %s245, 48
        %s247 = scalar_lea.vmem [#allocation7], %s246
        // Predicated region
        $region45: #{tpu_custom_call.1} parent=35 // pred_check
          %p248 = pneg %p83
        $region46: #{tpu_custom_call.1} parent=35 // pred_check_branch
          %250 = sbr.rel (%p248) target = $region48
        $region47: #{tpu_custom_call.1} parent=35 // pred_region
          %252 = dma.done %s244, 768
        $region48: #{tpu_custom_call.1} parent=35 // pred_fallthru
          _
        %s253 = sand.u32 %s20, 1
        %s254 = scalar_lea.sflag [#allocation3], %s253
        %s255 = sand.u32 %s96, 1
        %s256 = smul.addr %s255, 48
        %s257 = scalar_lea.vmem [#allocation8], %s256
        // Predicated region
        $region49: #{tpu_custom_call.1} parent=35 // pred_check
          %p258 = pneg %p109
        $region50: #{tpu_custom_call.1} parent=35 // pred_check_branch
          %260 = sbr.rel (%p258) target = $region52
        $region51: #{tpu_custom_call.1} parent=35 // pred_region
          %262 = dma.done %s254, 768
        $region52: #{tpu_custom_call.1} parent=35 // pred_fallthru
          _
        %p263 = pneg %p36
        %p264 = pneg %p33
        %p265 = pneg %p57
        %p266 = pneg %p54
        %s267 = sand.u32 %s20, 1
        %s268 = scalar_lea.sflag [#allocation3], %s267
        %s269 = sand.u32 %s70, 1
        %s270 = smul.addr %s269, 48
        %s271 = scalar_lea.vmem [#allocation7], %s270
        %p272 = pneg %p83
        %p273 = pneg %p80
        %s274 = sand.u32 %s20, 1
        %s275 = scalar_lea.sflag [#allocation3], %s274
        %s276 = sand.u32 %s96, 1
        %s277 = smul.addr %s276, 48
        %s278 = scalar_lea.vmem [#allocation8], %s277
        %p279 = pneg %p109
        %p280 = pneg %p106
        %p281 = pneg %p135
        %p282 = pneg %p132
        %s283 = sand.u32 %s122, 1
        %s284 = scalar_lea.sflag [#allocation4], %s283
        %s285 = sand.u32 %s122, 1
        %s286 = smul.addr %s285, 8
        %s287 = scalar_lea.vmem [#allocation9], %s286
        %v288 = vld [vmem:[#allocation2] sm:$0xff]
        %v289 = vld [vmem:[#allocation2 + $0x8] sm:$0xff]
        %v290 = vld [vmem:[#allocation5] sm:$0xff]
        %v291 = vld [vmem:[#allocation5 + $0x8] sm:$0xff]
        %v292 = vld [vmem:[%s247] sm:$0xff]
        %v293 = vld [vmem:[%s247 + $0x8] sm:$0xff]
        %v294 = vld [vmem:[%s247 + $0x10] sm:$0xff]
        %v295 = vld [vmem:[%s247 + $0x18] sm:$0xff]
        %v296 = vld [vmem:[%s247 + $0x20] sm:$0xff]
        %v297 = vld [vmem:[%s247 + $0x28] sm:$0xff]
        %v298 = vld [vmem:[%s257] sm:$0xff]
        %v299 = vld [vmem:[%s257 + $0x8] sm:$0xff]
        %v300 = vld [vmem:[%s257 + $0x10] sm:$0xff]
        %v301 = vld [vmem:[%s257 + $0x18] sm:$0xff]
        %v302 = vld [vmem:[%s257 + $0x20] sm:$0xff]
        %v303 = vld [vmem:[%s257 + $0x28] sm:$0xff]
        %v304 = vsub.f32 %v292, %v298
        %v305 = vsub.f32 %v293, %v299
        %v306 = vsub.f32 %v294, %v300
        %v307 = vsub.f32 %v295, %v301
        %v308 = vsub.f32 %v296, %v302
        %v309 = vsub.f32 %v297, %v303
        %vm310 = vcmask 130048
        %v312 = vsel %vm310, %v304, 0
        %v315 = vsel %vm310, %v305, 0
        %v318 = vsel %vm310, %v306, 0
        %v321 = vsel %vm310, %v307, 0
        %v324 = vsel %vm310, %v308, 0
        %v327 = vsel %vm310, %v309, 0
        %329 = vmatpush.msra.mxu0 0.0
        %330 = vmatpush.msra.mxu0 0.0
        %331 = vmatpush.msra.mxu0 0.0
        %332 = vmatpush.msra.mxu0 0.0
        %333 = vmatpush.msra.mxu0 0.0
        %334 = vmatpush.msra.mxu0 0.0
        %335 = vmatpush.msra.mxu0 0.0
        %336 = vmatpush.msra.mxu0 0.0
        %337 = vmatpush.msra.mxu0 0.0
        %338 = vmatpush.msra.mxu0 0.0
        %339 = vmatpush.msra.mxu0 0.0
        %340 = vmatpush.msra.mxu0 0.0
        %341 = vmatpush.msra.mxu0 0.0
        %342 = vmatpush.msra.mxu0 0.0
        %343 = vmatpush.msra.mxu0 %v291
        %344 = vmatpush.msra.mxu0 %v290
        %345 = vmatmul.f32.gmra.mxu0 %v312
        %v346 = vpop.f32.mrf.mxu0
        %v347 = vadd.f32 0.0, %v346
        %348 = vmatmul.f32.gmra.mxu0 %v315
        %v349 = vpop.f32.mrf.mxu0
        %v350 = vadd.f32 0.0, %v349
        %351 = vmatmul.f32.gmra.mxu0 %v318
        %v352 = vpop.f32.mrf.mxu0
        %v353 = vadd.f32 0.0, %v352
        %354 = vmatmul.f32.gmra.mxu0 %v321
        %v355 = vpop.f32.mrf.mxu0
        %v356 = vadd.f32 0.0, %v355
        %357 = vmatmul.f32.gmra.mxu0 %v324
        %v358 = vpop.f32.mrf.mxu0
        %v359 = vadd.f32 0.0, %v358
        %360 = vmatmul.f32.gmra.mxu0 %v327
        %v361 = vpop.f32.mrf.mxu0
        %v362 = vadd.f32 0.0, %v361
        %363 = vdwg.mxu0
        %v365 = vsel %vm310, %v288, 0
        %v368 = vsel %vm310, %v289, 0
        %370 = vmatpush.msra.mxu0 0.0
        %371 = vmatpush.msra.mxu0 0.0
        %372 = vmatpush.msra.mxu0 0.0
        %373 = vmatpush.msra.mxu0 0.0
        %374 = vmatpush.msra.mxu0 0.0
        %375 = vmatpush.msra.mxu0 0.0
        %376 = vmatpush.msra.mxu0 0.0
        %377 = vmatpush.msra.mxu0 0.0
        %378 = vmatpush.msra.mxu0 0.0
        %379 = vmatpush.msra.mxu0 0.0
        %380 = vmatpush.msra.mxu0 0.0
        %381 = vmatpush.msra.mxu0 0.0
        %382 = vmatpush.msra.mxu0 0.0
        %383 = vmatpush.msra.mxu0 0.0
        %384 = vmatpush.msra.mxu0 %v350
        %385 = vmatpush.msra.mxu0 %v347
        %386 = vmatmul.f32.gmra.mxu0 %v365
        %v387 = vpop.f32.mrf.mxu0
        %v388 = vadd.f32 0.0, %v387
        %389 = vmatmul.f32.gmra.mxu0 %v368
        %v390 = vpop.f32.mrf.mxu0
        %v391 = vadd.f32 0.0, %v390
        %392 = vdwg.mxu0
        %v393 = vmul.f32 %v388, %v388
        %v394 = vmul.f32 %v391, %v391
        %v395 = vadd.f32 %v393, 0.0
        %v396 = vadd.f32 %v394, 0.0
        %397 = vmatpush.msra.mxu0 0.0
        %398 = vmatpush.msra.mxu0 0.0
        %399 = vmatpush.msra.mxu0 0.0
        %400 = vmatpush.msra.mxu0 0.0
        %401 = vmatpush.msra.mxu0 0.0
        %402 = vmatpush.msra.mxu0 0.0
        %403 = vmatpush.msra.mxu0 0.0
        %404 = vmatpush.msra.mxu0 0.0
        %405 = vmatpush.msra.mxu0 0.0
        %406 = vmatpush.msra.mxu0 0.0
        %407 = vmatpush.msra.mxu0 0.0
        %408 = vmatpush.msra.mxu0 0.0
        %409 = vmatpush.msra.mxu0 0.0
        %410 = vmatpush.msra.mxu0 0.0
        %411 = vmatpush.msra.mxu0 %v356
        %412 = vmatpush.msra.mxu0 %v353
        %413 = vmatmul.f32.gmra.mxu0 %v365
        %v414 = vpop.f32.mrf.mxu0
        %v415 = vadd.f32 0.0, %v414
        %416 = vmatmul.f32.gmra.mxu0 %v368
        %v417 = vpop.f32.mrf.mxu0
        %v418 = vadd.f32 0.0, %v417
        %419 = vdwg.mxu0
        %v420 = vmul.f32 %v415, %v415
        %v421 = vmul.f32 %v418, %v418
        %v422 = vadd.f32 %v395, %v420
        %v423 = vadd.f32 %v396, %v421
        %424 = vmatpush.msra.mxu0 0.0
        %425 = vmatpush.msra.mxu0 0.0
        %426 = vmatpush.msra.mxu0 0.0
        %427 = vmatpush.msra.mxu0 0.0
        %428 = vmatpush.msra.mxu0 0.0
        %429 = vmatpush.msra.mxu0 0.0
        %430 = vmatpush.msra.mxu0 0.0
        %431 = vmatpush.msra.mxu0 0.0
        %432 = vmatpush.msra.mxu0 0.0
        %433 = vmatpush.msra.mxu0 0.0
        %434 = vmatpush.msra.mxu0 0.0
        %435 = vmatpush.msra.mxu0 0.0
        %436 = vmatpush.msra.mxu0 0.0
        %437 = vmatpush.msra.mxu0 0.0
        %438 = vmatpush.msra.mxu0 %v362
        %439 = vmatpush.msra.mxu0 %v359
        %440 = vmatmul.f32.gmra.mxu0 %v365
        %v441 = vpop.f32.mrf.mxu0
        %v442 = vadd.f32 0.0, %v441
        %443 = vmatmul.f32.gmra.mxu0 %v368
        %v444 = vpop.f32.mrf.mxu0
        %v445 = vadd.f32 0.0, %v444
        %446 = vdwg.mxu0
        %v447 = vmul.f32 %v442, %v442
        %v448 = vmul.f32 %v445, %v445
        %v449 = vadd.f32 %v422, %v447
        %v450 = vadd.f32 %v423, %v448
        %v451 = vsel %vm310, %v449, 0.0
        %v452 = vsel %vm310, %v450, 0.0
        %v453 = vadd.f32 %v451, %v452
        %454 = vadd.xlane.f32.xlu0 %v453
        %v455 = vpop.xlane.xlu0 %454
        %v456 = vrot.slane %v455, 4
        %v457 = vadd.f32 %v455, %v456
        %v458 = vrot.slane %v457, 2
        %v459 = vadd.f32 %v457, %v458
        %v460 = vrot.slane %v459, 1
        %v461 = vadd.f32 %v459, %v460
        %s462 = vtos %v461
        %v463 = vstv %s462
        %464 = vst [vmem:[%s287] sm:$0xff] %v463
        %s465 = sand.u32 %s122, 1
        %s466 = scalar_lea.sflag [#allocation4], %s465
        %s467 = sand.u32 %s122, 1
        %s468 = smul.addr %s467, 8
        %s469 = scalar_lea.vmem [#allocation9], %s468
        // Predicated region
        $region53: #{tpu_custom_call.1} parent=35 // pred_check
          %p470 = pneg %p132
        $region54: #{tpu_custom_call.1} parent=35 // pred_check_branch
          %472 = sbr.rel (%p470) target = $region56
        $region55: #{tpu_custom_call.1} parent=35 // pred_region
          %474 = vsyncadd %s466, 0
          %s475 = smul.addr %s20, 8
          %s476 = scalar_lea.hbm %s4, %s475
          %s478 = sshll.u32 %s469, 4
          %s479 = int_to_ptr.vmem [resolvable:$true] %s478
          %s480 = sshll.u32 %s476, 4
          %s481 = int_to_ptr.hbm [resolvable:$true] %s480
          %483 = dma.vmem_to_hbm [thread:$0]  %s479, 128, %s481, %s466
        $region56: #{tpu_custom_call.1} parent=35 // pred_fallthru
          _
      $region36: #{tpu_custom_call.1} parent=5 // pred_fallthru
        _
      %p484 = scmp.le.s32.totalorder 2, %s15
      // Predicated region
      $region57: #{tpu_custom_call.1} parent=5 // pred_check
        %p485 = pneg %p484
      $region58: #{tpu_custom_call.1} parent=5 // pred_check_branch
        %487 = sbr.rel (%p485) target = $region60
      $region59: #{tpu_custom_call.1} parent=5 // pred_region
        %s488 = ssub.s32 %s15, 2
        // Predicated region
        $region61: #{tpu_custom_call.1} parent=59 // pred_check
          %p489 = pneg %p138
        $region62: #{tpu_custom_call.1} parent=59 // pred_check_branch
          %491 = sbr.rel (%p489) target = $region64
        $region63: #{tpu_custom_call.1} parent=59 // pred_region
          %s492 = sand.u32 %s123, 1
          %s493 = scalar_lea.sflag [#allocation4], %s492
          %s494 = sand.u32 %s123, 1
          %s495 = smul.addr %s494, 8
          %s496 = scalar_lea.vmem [#allocation9], %s495
          %498 = dma.done %s493, 128
        $region64: #{tpu_custom_call.1} parent=59 // pred_fallthru
          _
      $region60: #{tpu_custom_call.1} parent=5 // pred_fallthru
        _
    $region6: #{tpu_custom_call.1} parent=1 // loop_footer
      %s19 = sadd.s32 1, %s15
    $region7: #{tpu_custom_call.1} parent=1 // loop_footer_branch
      %14 = sbr.rel target = $region3
    $region8: #{tpu_custom_call.1} parent=1 // loop_exit
      _
    %499 = vsyncpa [#allocation3], 1
    %s500 = scalar_lea.sflag [#allocation3], 1
    %501 = vsyncpa %s500, 1
    %502 = vsyncpa [#allocation6], 1
    %503 = vsyncpa [#allocation4], 1
    %s504 = scalar_lea.sflag [#allocation4], 1
    %505 = vsyncpa %s504, 1

</llo_original>
